<compile_context>
chip_gen: v5e
topology: v5e:2x2
jax: 0.10.0
libtpu: 0.0.40
codegen_flags: <defaults>
</compile_context>

<pallas_src>
import functools

import jax
import jax.numpy as jnp
from jax.experimental import pallas as pl
from jax.experimental.pallas import tpu as pltpu

_LANES = 128
_SUBLANES = 8
_ROW_ALIGN = 32      # multiple of 16 (bf16 packing) / 32 (int8/fp8) row granularity
_CORE_SPLITS = 2     # leading "parallel" axis; uses both TCs on v7x, harmless on 1-TC chips


def _wsl_kernel(alpha_ref, o1_ref, t1_ref, nll_ref, out_ref,
                acc_mse_ref, acc_nll_ref, *, inv_n1, inv_n2):
    step = pl.program_id(1)

    @pl.when(step == 0)
    def _init():
        acc_mse_ref[...] = jnp.zeros_like(acc_mse_ref)
        acc_nll_ref[...] = jnp.zeros_like(acc_nll_ref)

    # ---- MSE partial: sum((o1 - t1)^2) over this lane-dense tile ----
    # Sublane-aligned reduction (TR,128)->(TR/8,8,128) summed over axis 0:
    # pure VALU adds into a full-vreg (8,128) accumulator, no per-step XLU.
    d = o1_ref[...].astype(jnp.float32) - t1_ref[...].astype(jnp.float32)
    d2 = d * d
    acc_mse_ref[...] += jnp.sum(d2.reshape(-1, _SUBLANES, _LANES), axis=0)

    # ---- NLL partial: sum of the pre-gathered output2[i, target2[i]] ----
    g = nll_ref[...].astype(jnp.float32)
    acc_nll_ref[...] += jnp.sum(g.reshape(-1, _SUBLANES, _LANES), axis=0)

    @pl.when(step == pl.num_programs(1) - 1)
    def _finalize():
        a = alpha_ref[0]
        # Partial (this core's row range) losses normalized by the GLOBAL
        # counts; the wrapper sums the per-core rows, which is exact.
        loss1 = jnp.sum(acc_mse_ref[...]) * inv_n1
        loss2 = -jnp.sum(acc_nll_ref[...]) * inv_n2
        loss = a * loss1 + (1.0 - a) * loss2
        sub = jax.lax.broadcasted_iota(jnp.int32, (_SUBLANES, _LANES), 0)
        lane = jax.lax.broadcasted_iota(jnp.int32, (_SUBLANES, _LANES), 1)
        vec = jnp.where((sub == 0) & (lane == 0), loss,
              jnp.where((sub == 0) & (lane == 1), loss1,
              jnp.where((sub == 0) & (lane == 2), loss2, 0.0)))
        out_ref[...] = vec   # single unmasked lane-dense store, zero-filled padding


def weighted_sum_loss(output1, target1, output2, target2, alpha, *,
                      tile_rows=None):
    """Returns (loss, loss1, loss2) as scalar f32 arrays."""
    o1 = output1.reshape(-1)
    t1 = target1.reshape(-1)
    t2 = target2.reshape(-1).astype(jnp.int32)

    n1 = o1.shape[0]          # MSE numel (mean divisor)
    n2 = t2.shape[0]          # NLL batch size

    # NLL gather in the wrapper: the kernel then only streams an (N,)-sized
    # vector instead of the (N, C) matrix (no HBM transpose, C x less DMA).
    # TODO(synk): out-of-range class indices clamp here instead of raising
    # like torch.nn.NLLLoss.
    nll_vals = jnp.take_along_axis(output2, t2[:, None], axis=1).reshape(-1)

    r_needed = max(1, pl.cdiv(max(n1, n2), _LANES))

    bytes_per_row = _LANES * (o1.dtype.itemsize + t1.dtype.itemsize
                              + nll_vals.dtype.itemsize)
    if tile_rows is None:
        # ~6 MiB of input per grid step; double-buffered (~12 MiB) this still
        # fits v5e's 16 MiB default scoped VMEM and is well inside v6e/v7x.
        tile_rows = (6 << 20) // max(bytes_per_row, 1)
        tile_rows = max(64, min(4096, tile_rows))
    tile_rows = max(_ROW_ALIGN, (tile_rows // _ROW_ALIGN) * _ROW_ALIGN)
    tile_rows = min(tile_rows, pl.cdiv(r_needed, _ROW_ALIGN) * _ROW_ALIGN)

    tiles_per_core = pl.cdiv(pl.cdiv(r_needed, tile_rows), _CORE_SPLITS)
    r_total = _CORE_SPLITS * tiles_per_core * tile_rows
    n_pad = r_total * _LANES

    # Lane-dense layouts (keep input dtypes; cast to f32 per-tile in-kernel).
    # Padding contributes exactly 0 to both partial sums.
    o1p = jnp.pad(o1, (0, n_pad - n1)).reshape(r_total, _LANES)
    t1p = jnp.pad(t1, (0, n_pad - n1)).reshape(r_total, _LANES)
    gp = jnp.pad(nll_vals, (0, n_pad - n2)).reshape(r_total, _LANES)

    a = jnp.asarray(alpha, dtype=jnp.float32).reshape(1)

    kernel = functools.partial(_wsl_kernel,
                               inv_n1=1.0 / float(n1),
                               inv_n2=1.0 / float(n2))

    tile_bytes = tile_rows * bytes_per_row
    vmem_limit = int(min(48 << 20, max(2 * tile_bytes + (2 << 20), 16 << 20)))

    tpc = tiles_per_core
    row_map = lambda c, i: (c * tpc + i, 0)

    out = pl.pallas_call(
        kernel,
        out_shape=jax.ShapeDtypeStruct((_CORE_SPLITS * _SUBLANES, _LANES),
                                       jnp.float32),
        grid=(_CORE_SPLITS, tiles_per_core),
        in_specs=[
            pl.BlockSpec((1,), lambda c, i: (0,),
                         memory_space=pltpu.MemorySpace.SMEM),          # alpha
            pl.BlockSpec((tile_rows, _LANES), row_map),                 # output1
            pl.BlockSpec((tile_rows, _LANES), row_map),                 # target1
            pl.BlockSpec((tile_rows, _LANES), row_map),                 # gathered NLL vals
        ],
        out_specs=pl.BlockSpec((_SUBLANES, _LANES), lambda c, i: (c, 0)),
        scratch_shapes=[pltpu.VMEM((_SUBLANES, _LANES), jnp.float32),
                        pltpu.VMEM((_SUBLANES, _LANES), jnp.float32)],
        compiler_params=pltpu.CompilerParams(
            dimension_semantics=("parallel", "arbitrary"),
            vmem_limit_bytes=vmem_limit),
    )(a, o1p, t1p, gp)

    # Combine the per-core partial rows (all other lanes/sublanes are zero).
    res = jnp.sum(out, axis=0)
    return res[0], res[1], res[2]


if __name__ == "__main__":
    key = jax.random.PRNGKey(0)
    k1, k2, k3, k4 = jax.random.split(key, 4)

    N, C = 8, 4
    # regression head (MSE)
    output1 = jax.random.normal(k1, (N,), dtype=jnp.float32)
    target1 = jax.random.normal(k2, (N,), dtype=jnp.float32)
    # classification head (NLL): log-softmax outputs + integer targets
    logits = jax.random.normal(k3, (N, C), dtype=jnp.float32)
    output2 = jax.nn.log_softmax(logits, axis=-1)
    target2 = jax.random.randint(k4, (N,), 0, C, dtype=jnp.int32)

    # TODO(synk): train_alpha only changes backward behavior (nn.Parameter);
    # the forward pass treats alpha as a plain scalar, which is what we pass.
    alpha = 0.5

    loss, loss1, loss2 = weighted_sum_loss(output1, target1, output2, target2, alpha)
    jax.block_until_ready((loss, loss1, loss2))

    # pure-JAX reference check
    ref_l1 = jnp.mean((output1 - target1) ** 2)
    ref_l2 = -jnp.mean(output2[jnp.arange(N), target2])
    ref = alpha * ref_l1 + (1 - alpha) * ref_l2
    assert jnp.allclose(loss1, ref_l1, atol=1e-5), (loss1, ref_l1)
    assert jnp.allclose(loss2, ref_l2, atol=1e-5), (loss2, ref_l2)
    assert jnp.allclose(loss, ref, atol=1e-5), (loss, ref)

    print("KERNEL_OK")
</pallas_src>

<mosaic_0001>
module attributes {stable_mosaic.version = 11 : i64} {
  func.func @_wsl_kernel(%arg0: i32, %arg1: i32, %arg2: memref<1xf32, #tpu.memory_space<smem>>, %arg3: memref<32x128xf32, #tpu.memory_space<vmem>>, %arg4: memref<32x128xf32, #tpu.memory_space<vmem>>, %arg5: memref<32x128xf32, #tpu.memory_space<vmem>>, %arg6: memref<8x128xf32, #tpu.memory_space<vmem>>, %arg7: memref<8x128xf32, #tpu.memory_space<vmem>>, %arg8: memref<8x128xf32, #tpu.memory_space<vmem>>) attributes {dimension_semantics = [#tpu.dimension_semantics<parallel>, #tpu.dimension_semantics<arbitrary>], iteration_bounds = array<i64: 2, 1>, scalar_prefetch = 0 : i64, scratch_operands = 2 : i64, tpu.core_type = #tpu.core_type<tc>, window_params = [{transform_indices = @transform_0, window_bounds = array<i64: 1>}, {transform_indices = @transform_1, window_bounds = array<i64: 32, 128>}, {transform_indices = @transform_2, window_bounds = array<i64: 32, 128>}, {transform_indices = @transform_3, window_bounds = array<i64: 32, 128>}, {transform_indices = @transform_4, window_bounds = array<i64: 8, 128>}]} {
    %c0_i32 = arith.constant 0 : i32
    %0 = arith.cmpi eq, %arg1, %c0_i32 : i32
    %1 = arith.extui %0 : i1 to i32
    %c0_i32_0 = arith.constant 0 : i32
    %2 = arith.cmpi ne, %1, %c0_i32_0 : i32
    scf.if %2 {
      %cst_17 = arith.constant 0.000000e+00 : f32
      %21 = vector.broadcast %cst_17 : f32 to vector<8x128xf32>
      %c0_18 = arith.constant 0 : index
      %c0_19 = arith.constant 0 : index
      %22 = vector.load %arg7[%c0_18, %c0_19] : memref<8x128xf32, #tpu.memory_space<vmem>>, vector<8x128xf32>
      tpu.vector_store %arg7[%c0_18, %c0_19], %21 {strides = array<i32>} : memref<8x128xf32, #tpu.memory_space<vmem>>, vector<8x128xf32>,
      %cst_20 = arith.constant 0.000000e+00 : f32
      %23 = vector.broadcast %cst_20 : f32 to vector<8x128xf32>
      %c0_21 = arith.constant 0 : index
      %c0_22 = arith.constant 0 : index
      %24 = vector.load %arg8[%c0_21, %c0_22] : memref<8x128xf32, #tpu.memory_space<vmem>>, vector<8x128xf32>
      tpu.vector_store %arg8[%c0_21, %c0_22], %23 {strides = array<i32>} : memref<8x128xf32, #tpu.memory_space<vmem>>, vector<8x128xf32>,
    } else {
    }
    %c0 = arith.constant 0 : index
    %c0_1 = arith.constant 0 : index
    %3 = vector.load %arg3[%c0, %c0_1] : memref<32x128xf32, #tpu.memory_space<vmem>>, vector<32x128xf32>
    %c0_2 = arith.constant 0 : index
    %c0_3 = arith.constant 0 : index
    %4 = vector.load %arg4[%c0_2, %c0_3] : memref<32x128xf32, #tpu.memory_space<vmem>>, vector<32x128xf32>
    %5 = arith.subf %3, %4 : vector<32x128xf32>
    %6 = arith.mulf %5, %5 : vector<32x128xf32>
    %c0_4 = arith.constant 0 : index
    %c0_5 = arith.constant 0 : index
    %7 = vector.load %arg7[%c0_4, %c0_5] : memref<8x128xf32, #tpu.memory_space<vmem>>, vector<8x128xf32>
    %8 = vector.shape_cast %6 : vector<32x128xf32> to vector<4x8x128xf32>
    %cst = arith.constant dense<0.000000e+00> : vector<8x128xf32>
    %9 = vector.multi_reduction <add>, %8, %cst [0] : vector<4x8x128xf32> to vector<8x128xf32>
    %10 = arith.addf %7, %9 : vector<8x128xf32>
    %c0_6 = arith.constant 0 : index
    %c0_7 = arith.constant 0 : index
    %11 = vector.load %arg7[%c0_6, %c0_7] : memref<8x128xf32, #tpu.memory_space<vmem>>, vector<8x128xf32>
    tpu.vector_store %arg7[%c0_6, %c0_7], %10 {strides = array<i32>} : memref<8x128xf32, #tpu.memory_space<vmem>>, vector<8x128xf32>,
    %c0_8 = arith.constant 0 : index
    %c0_9 = arith.constant 0 : index
    %12 = vector.load %arg5[%c0_8, %c0_9] : memref<32x128xf32, #tpu.memory_space<vmem>>, vector<32x128xf32>
    %c0_10 = arith.constant 0 : index
    %c0_11 = arith.constant 0 : index
    %13 = vector.load %arg8[%c0_10, %c0_11] : memref<8x128xf32, #tpu.memory_space<vmem>>, vector<8x128xf32>
    %14 = vector.shape_cast %12 : vector<32x128xf32> to vector<4x8x128xf32>
    %cst_12 = arith.constant dense<0.000000e+00> : vector<8x128xf32>
    %15 = vector.multi_reduction <add>, %14, %cst_12 [0] : vector<4x8x128xf32> to vector<8x128xf32>
    %16 = arith.addf %13, %15 : vector<8x128xf32>
    %c0_13 = arith.constant 0 : index
    %c0_14 = arith.constant 0 : index
    %17 = vector.load %arg8[%c0_13, %c0_14] : memref<8x128xf32, #tpu.memory_space<vmem>>, vector<8x128xf32>
    tpu.vector_store %arg8[%c0_13, %c0_14], %16 {strides = array<i32>} : memref<8x128xf32, #tpu.memory_space<vmem>>, vector<8x128xf32>,
    %c0_i32_15 = arith.constant 0 : i32
    %18 = arith.cmpi eq, %arg1, %c0_i32_15 : i32
    %19 = arith.extui %18 : i1 to i32
    %c0_i32_16 = arith.constant 0 : i32
    %20 = arith.cmpi ne, %19, %c0_i32_16 : i32
    scf.if %20 {
      %c0_17 = arith.constant 0 : index
      %21 = memref.load %arg2[%c0_17] : memref<1xf32, #tpu.memory_space<smem>>
      %c0_18 = arith.constant 0 : index
      %c0_19 = arith.constant 0 : index
      %22 = vector.load %arg7[%c0_18, %c0_19] : memref<8x128xf32, #tpu.memory_space<vmem>>, vector<8x128xf32>
      %23 = vector.shape_cast %22 : vector<8x128xf32> to vector<1x8x128xf32>
      %cst_20 = arith.constant dense<0.000000e+00> : vector<1xf32>
      %24 = vector.multi_reduction <add>, %23, %cst_20 [1, 2] : vector<1x8x128xf32> to vector<1xf32>
      %25 = vector.shape_cast %24 : vector<1xf32> to vector<1x1x1xf32>
      %26 = vector.extract %25[0, 0, 0] : f32 from vector<1x1x1xf32>
      %cst_21 = arith.constant 1.250000e-01 : f32
      %27 = arith.mulf %26, %cst_21 : f32
      %c0_22 = arith.constant 0 : index
      %c0_23 = arith.constant 0 : index
      %28 = vector.load %arg8[%c0_22, %c0_23] : memref<8x128xf32, #tpu.memory_space<vmem>>, vector<8x128xf32>
      %29 = vector.shape_cast %28 : vector<8x128xf32> to vector<1x8x128xf32>
      %cst_24 = arith.constant dense<0.000000e+00> : vector<1xf32>
      %30 = vector.multi_reduction <add>, %29, %cst_24 [1, 2] : vector<1x8x128xf32> to vector<1xf32>
      %31 = vector.shape_cast %30 : vector<1xf32> to vector<1x1x1xf32>
      %32 = vector.extract %31[0, 0, 0] : f32 from vector<1x1x1xf32>
      %cst_25 = arith.constant 0.000000e+00 : f32
      %33 = arith.subf %cst_25, %32 : f32
      %cst_26 = arith.constant 1.250000e-01 : f32
      %34 = arith.mulf %33, %cst_26 : f32
      %35 = arith.mulf %21, %27 : f32
      %cst_27 = arith.constant 1.000000e+00 : f32
      %36 = arith.subf %cst_27, %21 : f32
      %37 = arith.mulf %36, %34 : f32
      %38 = arith.addf %35, %37 : f32
      %39 = tpu.iota {dimensions = array<i32: 0>} : vector<8x128xi32>
      %40 = tpu.iota {dimensions = array<i32: 1>} : vector<8x128xi32>
      %c0_i32_28 = arith.constant 0 : i32
      %41 = vector.broadcast %c0_i32_28 : i32 to vector<8x128xi32>
      %42 = arith.cmpi eq, %39, %41 : vector<8x128xi32>
      %c0_i32_29 = arith.constant 0 : i32
      %43 = vector.broadcast %c0_i32_29 : i32 to vector<8x128xi32>
      %44 = arith.cmpi eq, %40, %43 : vector<8x128xi32>
      %45 = arith.andi %42, %44 : vector<8x128xi1>
      %c0_i32_30 = arith.constant 0 : i32
      %46 = vector.broadcast %c0_i32_30 : i32 to vector<8x128xi32>
      %47 = arith.cmpi eq, %39, %46 : vector<8x128xi32>
      %c1_i32 = arith.constant 1 : i32
      %48 = vector.broadcast %c1_i32 : i32 to vector<8x128xi32>
      %49 = arith.cmpi eq, %40, %48 : vector<8x128xi32>
      %50 = arith.andi %47, %49 : vector<8x128xi1>
      %c0_i32_31 = arith.constant 0 : i32
      %51 = vector.broadcast %c0_i32_31 : i32 to vector<8x128xi32>
      %52 = arith.cmpi eq, %39, %51 : vector<8x128xi32>
      %c2_i32 = arith.constant 2 : i32
      %53 = vector.broadcast %c2_i32 : i32 to vector<8x128xi32>
      %54 = arith.cmpi eq, %40, %53 : vector<8x128xi32>
      %55 = arith.andi %52, %54 : vector<8x128xi1>
      %cst_32 = arith.constant 0.000000e+00 : f32
      %56 = vector.broadcast %34 : f32 to vector<8x128xf32>
      %57 = vector.broadcast %cst_32 : f32 to vector<8x128xf32>
      %58 = arith.select %55, %56, %57 : vector<8x128xi1>, vector<8x128xf32>
      %59 = vector.broadcast %27 : f32 to vector<8x128xf32>
      %60 = arith.select %50, %59, %58 : vector<8x128xi1>, vector<8x128xf32>
      %61 = vector.broadcast %38 : f32 to vector<8x128xf32>
      %62 = arith.select %45, %61, %60 : vector<8x128xi1>, vector<8x128xf32>
      %c0_33 = arith.constant 0 : index
      %c0_34 = arith.constant 0 : index
      %63 = vector.load %arg6[%c0_33, %c0_34] : memref<8x128xf32, #tpu.memory_space<vmem>>, vector<8x128xf32>
      tpu.vector_store %arg6[%c0_33, %c0_34], %62 {strides = array<i32>} : memref<8x128xf32, #tpu.memory_space<vmem>>, vector<8x128xf32>,
    } else {
    }
    return
  }
  func.func @transform_0(%arg0: i32, %arg1: i32) -> i32 {
    %c0_i32 = arith.constant 0 : i32
    %c0_i32_0 = arith.constant 0 : i32
    return %c0_i32 : i32
  }
  func.func @transform_1(%arg0: i32, %arg1: i32) -> (i32, i32) {
    %c1_i32 = arith.constant 1 : i32
    %0 = arith.muli %arg0, %c1_i32 : i32
    %1 = arith.addi %0, %arg1 : i32
    %c0_i32 = arith.constant 0 : i32
    %c0_i32_0 = arith.constant 0 : i32
    return %1, %c0_i32 : i32, i32
  }
  func.func @transform_2(%arg0: i32, %arg1: i32) -> (i32, i32) {
    %c1_i32 = arith.constant 1 : i32
    %0 = arith.muli %arg0, %c1_i32 : i32
    %1 = arith.addi %0, %arg1 : i32
    %c0_i32 = arith.constant 0 : i32
    %c0_i32_0 = arith.constant 0 : i32
    return %1, %c0_i32 : i32, i32
  }
  func.func @transform_3(%arg0: i32, %arg1: i32) -> (i32, i32) {
    %c1_i32 = arith.constant 1 : i32
    %0 = arith.muli %arg0, %c1_i32 : i32
    %1 = arith.addi %0, %arg1 : i32
    %c0_i32 = arith.constant 0 : i32
    %c0_i32_0 = arith.constant 0 : i32
    return %1, %c0_i32 : i32, i32
  }
  func.func @transform_4(%arg0: i32, %arg1: i32) -> (i32, i32) {
    %c0_i32 = arith.constant 0 : i32
    %c0_i32_0 = arith.constant 0 : i32
    return %arg0, %c0_i32 : i32, i32
  }
}

</mosaic_0001>

<llo_original>
// kernel: tpu_custom_call.1
$region0: #{tpu_custom_call.1}
  #allocation0 [shape = 'u32[]', space=smem, size = 0x4, offset = 0x4, fixed_abs, tag = 'smem constant byte address 0x4 - core index']
  #allocation1 [shape = 'u32[72,128]{1,0:T(1,128)}', space=vmem, size = 0x9000, scoped, tag = 'internal scratch']
  #allocation2 [shape = 'f32[8,128]{1,0:T(8,128)}', space=vmem, size = 0x1000, scoped, tag = 'scratch operand']
  #allocation3 [shape = 'f32[8,128]{1,0:T(8,128)}', space=vmem, size = 0x1000, scoped, tag = 'scratch operand']
  #allocation4 [shape = 'f32[1]{0:T(128)S(6)}', space=smem, size = 0x200, scoped, tag = 'scoped memory for tpu_custom_call.1']
  %s0 = inlined_call_operand.<no memory space> [shape: f32[1], index: 0, kind: input, shape index: {}]
  %s1 = inlined_call_operand.hbm [shape: f32[64,128], index: 1, kind: input, shape index: {}]
  %s2 = inlined_call_operand.hbm [shape: f32[64,128], index: 2, kind: input, shape index: {}]
  %s3 = inlined_call_operand.hbm [shape: f32[64,128], index: 3, kind: input, shape index: {}]
  %s4 = inlined_call_operand.hbm [shape: f32[16,128], index: 4, kind: output, shape index: {}]
  %s5 = sld [smem:[#allocation0]]
  $region69: #{tpu_custom_call.1} parent=0
    _
  %s7 = ssub.s32 1, %s5
  %s8 = scalar_select 0, %s7, %s5
  %9 = sst [smem:[#allocation4]] %s0
  $region1: #{tpu_custom_call.1} parent=0
    #allocation5 [shape = 'u8[32768]{0}', space=vmem, size = 0x8000, scoped, tag = 'input window, operand 1']
    #allocation6 [shape = 's32[2]{0}', space=sflag, size = 0x8, scoped, tag = 'scoped memory for tpu_custom_call.1']
    #allocation7 [shape = 's32[2]{0}', space=sflag, size = 0x8, scoped, tag = 'scoped memory for tpu_custom_call.1']
    #allocation8 [shape = 'u8[32768]{0}', space=vmem, size = 0x8000, scoped, tag = 'input window, operand 2']
    #allocation9 [shape = 's32[2]{0}', space=sflag, size = 0x8, scoped, tag = 'scoped memory for tpu_custom_call.1']
    #allocation10 [shape = 'u8[32768]{0}', space=vmem, size = 0x8000, scoped, tag = 'input window, operand 3']
    #allocation11 [shape = 'u8[8192]{0}', space=vmem, size = 0x2000, scoped, tag = 'output window, operand 0']
    %10 = vsyncpa [#allocation6], 0
    %s11 = scalar_lea.sflag [#allocation6], 1
    %12 = vsyncpa %s11, 0
    %13 = vsyncpa [#allocation9], 0
    %s14 = scalar_lea.sflag [#allocation9], 1
    %15 = vsyncpa %s14, 0
    %16 = vsyncpa [#allocation7], 0
    %s17 = scalar_lea.sflag [#allocation7], 1
    %18 = vsyncpa %s17, 0
    loop: start=0, step=1, limit=4
    $region2: #{tpu_custom_call.1} parent=1 // loop_pre_header
      _
    $region3: #{tpu_custom_call.1} parent=1 // loop_header
      %s20 = sphi 0, %s24
      %p21 = scmp.ge.s32.totalorder %s20, 4
      %s27 = sphi 0, %s39
      %s28 = sphi 0, %s35
      %s29 = sphi 0, %s27
      %s30 = sphi 0, %s28
      %s31 = sphi 0, %s29
      %s32 = sphi 0, %s30
      %s40 = sphi 0, %s40
      %s42 = sphi 0, %s40
      %s43 = sphi 0, %s42
      %s57 = sphi 0, %s43
      %s65 = sphi 0, %s67
      %s68 = sphi 0, %s65
      %s69 = sphi 0, %s68
      %s85 = sphi 0, %s69
      %s93 = sphi 0, %s95
      %s96 = sphi 0, %s93
      %s97 = sphi 0, %s96
      %s113 = sphi 0, %s97
      %s121 = sphi 0, %s123
      %s124 = sphi 0, %s121
      %s125 = sphi 0, %s124
      %s141 = sphi 0, %s125
      %s147 = sphi 0, %s149
      %s150 = sphi 0, %s147
      %s151 = sphi 0, %s150
      %s167 = sphi 0, %s151
    $region4: #{tpu_custom_call.1} parent=1 // loop_header_branch
      %23 = sbr.rel (%p21) target = $region8
    $region5: #{tpu_custom_call.1} parent=1 // loop_body
      %s25 = ssub.s32 %s20, 1
      %s26 = ssub.s32 %s20, 2
      %s33 = sadd.s32 1, %s28
      %p34 = scmp.ge.s32.totalorder %s33, 1
      %s35 = scalar_select %p34, 0, %s33
      %s36 = sadd.s32 1, %s27
      %s37 = scalar_select %p34, %s36, %s27
      %p38 = scmp.ge.s32.totalorder %s37, 2
      %s39 = scalar_select %p38, 0, %s37
      %s41 = sadd.s32 %s40, 1
      %p44 = scmp.eq.s32.totalorder %s20, 1
      %p45 = scmp.ne.s32.totalorder %s40, %s42
      %p46 = scmp.eq.s32.totalorder %s20, 0
      %p47 = por %p45, %p46
      %p48 = scmp.ne.s32.totalorder %s40, %s42
      %p49 = scmp.eq.s32.totalorder %s25, 1
      %p50 = por %p48, %p49
      %p51 = scmp.ne.s32.totalorder %s42, %s43
      %p52 = scmp.eq.s32.totalorder %s25, 0
      %p53 = por %p51, %p52
      %p54 = scmp.ne.s32.totalorder %s42, %s43
      %p55 = scmp.eq.s32.totalorder %s26, 1
      %p56 = por %p54, %p55
      %p58 = scmp.ne.s32.totalorder %s43, %s57
      %p59 = scmp.eq.s32.totalorder %s26, 0
      %p60 = por %p58, %p59
      %s61 = sadd.s32 %s27, %s28
      %s62 = sadd.s32 %s39, %s35
      %s63 = ssub.s32 %s61, %s62
      %p64 = scmp.eq.s32.totalorder %s63, 0
      %s66 = sadd.s32 %s65, 1
      %s67 = scalar_select %p64, %s65, %s66
      %p70 = pneg %p64
      %p71 = scmp.eq.s32.totalorder %s20, 1
      %p72 = por %p70, %p71
      %p73 = scmp.ne.s32.totalorder %s65, %s68
      %p74 = scmp.eq.s32.totalorder %s20, 0
      %p75 = por %p73, %p74
      %p76 = scmp.ne.s32.totalorder %s65, %s68
      %p77 = scmp.eq.s32.totalorder %s25, 1
      %p78 = por %p76, %p77
      %p79 = scmp.ne.s32.totalorder %s68, %s69
      %p80 = scmp.eq.s32.totalorder %s25, 0
      %p81 = por %p79, %p80
      %p82 = scmp.ne.s32.totalorder %s68, %s69
      %p83 = scmp.eq.s32.totalorder %s26, 1
      %p84 = por %p82, %p83
      %p86 = scmp.ne.s32.totalorder %s69, %s85
      %p87 = scmp.eq.s32.totalorder %s26, 0
      %p88 = por %p86, %p87
      %s89 = sadd.s32 %s27, %s28
      %s90 = sadd.s32 %s39, %s35
      %s91 = ssub.s32 %s89, %s90
      %p92 = scmp.eq.s32.totalorder %s91, 0
      %s94 = sadd.s32 %s93, 1
      %s95 = scalar_select %p92, %s93, %s94
      %p98 = pneg %p92
      %p99 = scmp.eq.s32.totalorder %s20, 1
      %p100 = por %p98, %p99
      %p101 = scmp.ne.s32.totalorder %s93, %s96
      %p102 = scmp.eq.s32.totalorder %s20, 0
      %p103 = por %p101, %p102
      %p104 = scmp.ne.s32.totalorder %s93, %s96
      %p105 = scmp.eq.s32.totalorder %s25, 1
      %p106 = por %p104, %p105
      %p107 = scmp.ne.s32.totalorder %s96, %s97
      %p108 = scmp.eq.s32.totalorder %s25, 0
      %p109 = por %p107, %p108
      %p110 = scmp.ne.s32.totalorder %s96, %s97
      %p111 = scmp.eq.s32.totalorder %s26, 1
      %p112 = por %p110, %p111
      %p114 = scmp.ne.s32.totalorder %s97, %s113
      %p115 = scmp.eq.s32.totalorder %s26, 0
      %p116 = por %p114, %p115
      %s117 = sadd.s32 %s27, %s28
      %s118 = sadd.s32 %s39, %s35
      %s119 = ssub.s32 %s117, %s118
      %p120 = scmp.eq.s32.totalorder %s119, 0
      %s122 = sadd.s32 %s121, 1
      %s123 = scalar_select %p120, %s121, %s122
      %p126 = pneg %p120
      %p127 = scmp.eq.s32.totalorder %s20, 1
      %p128 = por %p126, %p127
      %p129 = scmp.ne.s32.totalorder %s121, %s124
      %p130 = scmp.eq.s32.totalorder %s20, 0
      %p131 = por %p129, %p130
      %p132 = scmp.ne.s32.totalorder %s121, %s124
      %p133 = scmp.eq.s32.totalorder %s25, 1
      %p134 = por %p132, %p133
      %p135 = scmp.ne.s32.totalorder %s124, %s125
      %p136 = scmp.eq.s32.totalorder %s25, 0
      %p137 = por %p135, %p136
      %p138 = scmp.ne.s32.totalorder %s124, %s125
      %p139 = scmp.eq.s32.totalorder %s26, 1
      %p140 = por %p138, %p139
      %p142 = scmp.ne.s32.totalorder %s125, %s141
      %p143 = scmp.eq.s32.totalorder %s26, 0
      %p144 = por %p142, %p143
      %s145 = ssub.s32 %s27, %s39
      %p146 = scmp.eq.s32.totalorder %s145, 0
      %s148 = sadd.s32 %s147, 1
      %s149 = scalar_select %p146, %s147, %s148
      %p152 = pneg %p146
      %p153 = scmp.eq.s32.totalorder %s20, 1
      %p154 = por %p152, %p153
      %p155 = scmp.ne.s32.totalorder %s147, %s150
      %p156 = scmp.eq.s32.totalorder %s20, 0
      %p157 = por %p155, %p156
      %p158 = scmp.ne.s32.totalorder %s147, %s150
      %p159 = scmp.eq.s32.totalorder %s25, 1
      %p160 = por %p158, %p159
      %p161 = scmp.ne.s32.totalorder %s150, %s151
      %p162 = scmp.eq.s32.totalorder %s25, 0
      %p163 = por %p161, %p162
      %p164 = scmp.ne.s32.totalorder %s150, %s151
      %p165 = scmp.eq.s32.totalorder %s26, 1
      %p166 = por %p164, %p165
      %p168 = scmp.ne.s32.totalorder %s151, %s167
      %p169 = scmp.eq.s32.totalorder %s26, 0
      %p170 = por %p168, %p169
      %p171 = scmp.le.s32.totalorder 1, %s20
      %p172 = scmp.lt.s32.totalorder %s20, 3
      %p173 = pnand %p171, %p172
      %p174 = pneg %p173
      // Predicated region
      $region9: #{tpu_custom_call.1} parent=5 // pred_check
        _
      $region10: #{tpu_custom_call.1} parent=5 // pred_check_branch
        %176 = sbr.rel (%p173) target = $region12
      $region11: #{tpu_custom_call.1} parent=5 // pred_region
        %s177 = ssub.s32 %s20, 1
        // Predicated region
        $region13: #{tpu_custom_call.1} parent=11 // pred_check
          %p178 = pneg %p53
        $region14: #{tpu_custom_call.1} parent=11 // pred_check_branch
          %180 = sbr.rel (%p178) target = $region16
        $region15: #{tpu_custom_call.1} parent=11 // pred_region
          _
        $region16: #{tpu_custom_call.1} parent=11 // pred_fallthru
          _
      $region12: #{tpu_custom_call.1} parent=5 // pred_fallthru
        _
      %p181 = scmp.lt.s32.totalorder %s20, 2
      // Predicated region
      $region17: #{tpu_custom_call.1} parent=5 // pred_check
        %p182 = pneg %p181
      $region18: #{tpu_custom_call.1} parent=5 // pred_check_branch
        %184 = sbr.rel (%p182) target = $region20
      $region19: #{tpu_custom_call.1} parent=5 // pred_region
        // Predicated region
        $region21: #{tpu_custom_call.1} parent=19 // pred_check
          %p185 = pneg %p75
        $region22: #{tpu_custom_call.1} parent=19 // pred_check_branch
          %187 = sbr.rel (%p185) target = $region24
        $region23: #{tpu_custom_call.1} parent=19 // pred_region
          %s188 = sand.u32 %s65, 1
          %s189 = scalar_lea.sflag [#allocation6], %s188
          %s190 = sand.u32 %s65, 1
          %s191 = smul.addr %s190, 32
          %s192 = scalar_lea.vmem [#allocation5], %s191
          %s193 = sadd.s32 %s27, %s28
          %s194 = smul.u32 4, %s193
          %196 = vsyncadd %s189, 0
          %s197 = smul.addr %s194, 8
          %s198 = scalar_lea.hbm %s1, %s197
          %s199 = sshll.u32 %s198, 4
          %s200 = int_to_ptr.hbm [resolvable:$true] %s199
          %s201 = sshll.u32 %s192, 4
          %s202 = int_to_ptr.vmem [resolvable:$true] %s201
          %207 = dma.hbm_to_vmem [thread:$0]  %s200, 512, %s202, %s189, 128, 128, 8
        $region24: #{tpu_custom_call.1} parent=19 // pred_fallthru
          _
        // Predicated region
        $region25: #{tpu_custom_call.1} parent=19 // pred_check
          %p208 = pneg %p103
        $region26: #{tpu_custom_call.1} parent=19 // pred_check_branch
          %210 = sbr.rel (%p208) target = $region28
        $region27: #{tpu_custom_call.1} parent=19 // pred_region
          %s211 = sand.u32 %s20, 1
          %s212 = scalar_lea.sflag [#allocation9], %s211
          %s213 = sand.u32 %s93, 1
          %s214 = smul.addr %s213, 32
          %s215 = scalar_lea.vmem [#allocation8], %s214
          %s216 = sadd.s32 %s27, %s28
          %s217 = smul.u32 4, %s216
          %219 = vsyncadd %s212, 0
          %s220 = smul.addr %s217, 8
          %s221 = scalar_lea.hbm %s2, %s220
          %s222 = sshll.u32 %s221, 4
          %s223 = int_to_ptr.hbm [resolvable:$true] %s222
          %s224 = sshll.u32 %s215, 4
          %s225 = int_to_ptr.vmem [resolvable:$true] %s224
          %230 = dma.hbm_to_vmem [thread:$0]  %s223, 512, %s225, %s212, 128, 128, 8
        $region28: #{tpu_custom_call.1} parent=19 // pred_fallthru
          _
        // Predicated region
        $region29: #{tpu_custom_call.1} parent=19 // pred_check
          %p231 = pneg %p131
        $region30: #{tpu_custom_call.1} parent=19 // pred_check_branch
          %233 = sbr.rel (%p231) target = $region32
        $region31: #{tpu_custom_call.1} parent=19 // pred_region
          %s234 = sand.u32 %s20, 1
          %s235 = scalar_lea.sflag [#allocation9], %s234
          %s236 = sand.u32 %s121, 1
          %s237 = smul.addr %s236, 32
          %s238 = scalar_lea.vmem [#allocation10], %s237
          %s239 = sadd.s32 %s27, %s28
          %s240 = smul.u32 4, %s239
          %242 = vsyncadd %s235, 0
          %s243 = smul.addr %s240, 8
          %s244 = scalar_lea.hbm %s3, %s243
          %s245 = sshll.u32 %s244, 4
          %s246 = int_to_ptr.hbm [resolvable:$true] %s245
          %s247 = sshll.u32 %s238, 4
          %s248 = int_to_ptr.vmem [resolvable:$true] %s247
          %253 = dma.hbm_to_vmem [thread:$0]  %s246, 512, %s248, %s235, 128, 128, 8
        $region32: #{tpu_custom_call.1} parent=19 // pred_fallthru
          _
      $region20: #{tpu_custom_call.1} parent=5 // pred_fallthru
        _
      %p254 = scmp.le.s32.totalorder 1, %s20
      %p255 = scmp.lt.s32.totalorder %s20, 3
      %p256 = pnand %p254, %p255
      %p257 = pneg %p256
      // Predicated region
      $region33: #{tpu_custom_call.1} parent=5 // pred_check
        _
      $region34: #{tpu_custom_call.1} parent=5 // pred_check_branch
        %259 = sbr.rel (%p256) target = $region36
      $region35: #{tpu_custom_call.1} parent=5 // pred_region
        %s260 = ssub.s32 %s20, 1
        %s261 = sand.u32 %s68, 1
        %s262 = scalar_lea.sflag [#allocation6], %s261
        %s263 = sand.u32 %s68, 1
        %s264 = smul.addr %s263, 32
        %s265 = scalar_lea.vmem [#allocation5], %s264
        // Predicated region
        $region37: #{tpu_custom_call.1} parent=35 // pred_check
          %p266 = pneg %p81
        $region38: #{tpu_custom_call.1} parent=35 // pred_check_branch
          %268 = sbr.rel (%p266) target = $region40
        $region39: #{tpu_custom_call.1} parent=35 // pred_region
          %270 = dma.done %s262, 512
        $region40: #{tpu_custom_call.1} parent=35 // pred_fallthru
          _
        %s271 = sand.u32 %s25, 1
        %s272 = scalar_lea.sflag [#allocation9], %s271
        %s273 = sand.u32 %s96, 1
        %s274 = smul.addr %s273, 32
        %s275 = scalar_lea.vmem [#allocation8], %s274
        // Predicated region
        $region41: #{tpu_custom_call.1} parent=35 // pred_check
          %p276 = pneg %p109
        $region42: #{tpu_custom_call.1} parent=35 // pred_check_branch
          %278 = sbr.rel (%p276) target = $region44
        $region43: #{tpu_custom_call.1} parent=35 // pred_region
          %280 = dma.done %s272, 512
        $region44: #{tpu_custom_call.1} parent=35 // pred_fallthru
          _
        %s281 = sand.u32 %s25, 1
        %s282 = scalar_lea.sflag [#allocation9], %s281
        %s283 = sand.u32 %s124, 1
        %s284 = smul.addr %s283, 32
        %s285 = scalar_lea.vmem [#allocation10], %s284
        // Predicated region
        $region45: #{tpu_custom_call.1} parent=35 // pred_check
          %p286 = pneg %p137
        $region46: #{tpu_custom_call.1} parent=35 // pred_check_branch
          %288 = sbr.rel (%p286) target = $region48
        $region47: #{tpu_custom_call.1} parent=35 // pred_region
          %290 = dma.done %s282, 512
        $region48: #{tpu_custom_call.1} parent=35 // pred_fallthru
          _
        %p291 = pneg %p53
        %p292 = pneg %p50
        %s293 = sand.u32 %s68, 1
        %s294 = scalar_lea.sflag [#allocation6], %s293
        %s295 = sand.u32 %s68, 1
        %s296 = smul.addr %s295, 32
        %s297 = scalar_lea.vmem [#allocation5], %s296
        %p298 = pneg %p81
        %p299 = pneg %p78
        %s300 = sand.u32 %s25, 1
        %s301 = scalar_lea.sflag [#allocation9], %s300
        %s302 = sand.u32 %s96, 1
        %s303 = smul.addr %s302, 32
        %s304 = scalar_lea.vmem [#allocation8], %s303
        %p305 = pneg %p109
        %p306 = pneg %p106
        %s307 = sand.u32 %s25, 1
        %s308 = scalar_lea.sflag [#allocation9], %s307
        %s309 = sand.u32 %s124, 1
        %s310 = smul.addr %s309, 32
        %s311 = scalar_lea.vmem [#allocation10], %s310
        %p312 = pneg %p137
        %p313 = pneg %p134
        %p314 = pneg %p163
        %p315 = pneg %p160
        %s316 = sand.u32 %s150, 1
        %s317 = scalar_lea.sflag [#allocation7], %s316
        %s318 = sand.u32 %s150, 1
        %s319 = smul.addr %s318, 8
        %s320 = scalar_lea.vmem [#allocation11], %s319
        %s321 = sadd.s32 %s29, %s30
        %s322 = smul.u32 4, %s321
        %s323 = sadd.s32 %s29, %s30
        %s324 = smul.u32 4, %s323
        %s325 = sadd.s32 %s29, %s30
        %s326 = smul.u32 4, %s325
        %p327 = scmp.eq.s32.totalorder %s30, 0
        // Predicated region
        $region49: #{tpu_custom_call.1} parent=35 // pred_check
          %p328 = pneg %p327
        $region50: #{tpu_custom_call.1} parent=35 // pred_check_branch
          %330 = sbr.rel (%p328) target = $region52
        $region51: #{tpu_custom_call.1} parent=35 // pred_region
          %331 = vst [vmem:[#allocation2] sm:$0xff] 0.0
          %332 = vst [vmem:[#allocation3] sm:$0xff] 0.0
        $region52: #{tpu_custom_call.1} parent=35 // pred_fallthru
          _
        %v333 = vld [vmem:[%s265] sm:$0xff]
        %v334 = vld [vmem:[%s265 + $0x8] sm:$0xff]
        %v335 = vld [vmem:[%s265 + $0x10] sm:$0xff]
        %v336 = vld [vmem:[%s265 + $0x18] sm:$0xff]
        %v337 = vld [vmem:[%s275] sm:$0xff]
        %v338 = vld [vmem:[%s275 + $0x8] sm:$0xff]
        %v339 = vld [vmem:[%s275 + $0x10] sm:$0xff]
        %v340 = vld [vmem:[%s275 + $0x18] sm:$0xff]
        %v341 = vsub.f32 %v333, %v337
        %v342 = vsub.f32 %v334, %v338
        %v343 = vsub.f32 %v335, %v339
        %v344 = vsub.f32 %v336, %v340
        %v345 = vmul.f32 %v341, %v341
        %v346 = vmul.f32 %v342, %v342
        %v347 = vmul.f32 %v343, %v343
        %v348 = vmul.f32 %v344, %v344
        %v349 = vld [vmem:[#allocation2] sm:$0xff]
        %v350 = vadd.f32 %v345, %v346
        %v351 = vadd.f32 %v350, %v347
        %v352 = vadd.f32 %v351, %v348
        %v353 = vadd.f32 %v349, %v352
        %354 = vst [vmem:[#allocation2] sm:$0xff] %v353
        %v355 = vld [vmem:[%s285] sm:$0xff]
        %v356 = vld [vmem:[%s285 + $0x8] sm:$0xff]
        %v357 = vld [vmem:[%s285 + $0x10] sm:$0xff]
        %v358 = vld [vmem:[%s285 + $0x18] sm:$0xff]
        %v359 = vld [vmem:[#allocation3] sm:$0xff]
        %v360 = vadd.f32 %v355, %v356
        %v361 = vadd.f32 %v360, %v357
        %v362 = vadd.f32 %v361, %v358
        %v363 = vadd.f32 %v359, %v362
        %364 = vst [vmem:[#allocation3] sm:$0xff] %v363
        // Predicated region
        $region53: #{tpu_custom_call.1} parent=35 // pred_check
          %p365 = pneg %p327
        $region54: #{tpu_custom_call.1} parent=35 // pred_check_branch
          %367 = sbr.rel (%p365) target = $region56
        $region55: #{tpu_custom_call.1} parent=35 // pred_region
          %s368 = sld [smem:[#allocation4]]
          %v369 = vld [vmem:[#allocation2] sm:$0xff]
          %370 = vadd.xlane.f32.xlu0 %v369
          %v371 = vpop.xlane.xlu0 %370
          %v372 = vrot.slane %v371, 4
          %v373 = vadd.f32 %v371, %v372
          %v374 = vrot.slane %v373, 2
          %v375 = vadd.f32 %v373, %v374
          %v376 = vrot.slane %v375, 1
          %v377 = vadd.f32 %v375, %v376
          %s378 = vtos %v377
          %s379 = smul.f32 %s378, 0.125
          %v380 = vld [vmem:[#allocation3] sm:$0xff]
          %381 = vadd.xlane.f32.xlu0 %v380
          %v382 = vpop.xlane.xlu0 %381
          %v383 = vrot.slane %v382, 4
          %v384 = vadd.f32 %v382, %v383
          %v385 = vrot.slane %v384, 2
          %v386 = vadd.f32 %v384, %v385
          %v387 = vrot.slane %v386, 1
          %v388 = vadd.f32 %v386, %v387
          %s389 = vtos %v388
          %s390 = ssub.f32 0.0, %s389
          %s391 = smul.f32 %s390, 0.125
          %s392 = smul.f32 %s368, %s379
          %s393 = ssub.f32 1.0, %s368
          %s394 = smul.f32 %s393, %s391
          %s395 = sadd.f32 %s392, %s394
          %v396 = vlaneseq
          %v397 = vshrl.u32 %v396, 7
          %v398 = vlaneseq
          %v399 = vand.u32 %v398, 127
          %vm400 = vcmp.eq.s32.totalorder %v397, 0
          %vm401 = vcmp.eq.s32.totalorder %v399, 0
          %vm402 = vmand %vm400, %vm401
          %vm403 = vcmp.eq.s32.totalorder %v399, 1
          %vm404 = vmand %vm400, %vm403
          %vm405 = vcmp.eq.s32.totalorder %v399, 2
          %vm406 = vmand %vm400, %vm405
          %v407 = vstv %s391
          %v408 = vsel %vm406, %v407, 0.0
          %v409 = vstv %s379
          %v410 = vsel %vm404, %v409, %v408
          %v411 = vstv %s395
          %v412 = vsel %vm402, %v411, %v410
          %413 = vst [vmem:[%s320] sm:$0xff] %v412
        $region56: #{tpu_custom_call.1} parent=35 // pred_fallthru
          _
        %s414 = sand.u32 %s150, 1
        %s415 = scalar_lea.sflag [#allocation7], %s414
        %s416 = sand.u32 %s150, 1
        %s417 = smul.addr %s416, 8
        %s418 = scalar_lea.vmem [#allocation11], %s417
        // Predicated region
        $region57: #{tpu_custom_call.1} parent=35 // pred_check
          %p419 = pneg %p160
        $region58: #{tpu_custom_call.1} parent=35 // pred_check_branch
          %421 = sbr.rel (%p419) target = $region60
        $region59: #{tpu_custom_call.1} parent=35 // pred_region
          %423 = vsyncadd %s415, 0
          %s424 = smul.addr %s29, 8
          %s425 = scalar_lea.hbm %s4, %s424
          %s427 = sshll.u32 %s418, 4
          %s428 = int_to_ptr.vmem [resolvable:$true] %s427
          %s429 = sshll.u32 %s425, 4
          %s430 = int_to_ptr.hbm [resolvable:$true] %s429
          %432 = dma.vmem_to_hbm [thread:$0]  %s428, 128, %s430, %s415
        $region60: #{tpu_custom_call.1} parent=35 // pred_fallthru
          _
      $region36: #{tpu_custom_call.1} parent=5 // pred_fallthru
        _
      %p433 = scmp.le.s32.totalorder 2, %s20
      // Predicated region
      $region61: #{tpu_custom_call.1} parent=5 // pred_check
        %p434 = pneg %p433
      $region62: #{tpu_custom_call.1} parent=5 // pred_check_branch
        %436 = sbr.rel (%p434) target = $region64
      $region63: #{tpu_custom_call.1} parent=5 // pred_region
        %s437 = ssub.s32 %s20, 2
        // Predicated region
        $region65: #{tpu_custom_call.1} parent=63 // pred_check
          %p438 = pneg %p166
        $region66: #{tpu_custom_call.1} parent=63 // pred_check_branch
          %440 = sbr.rel (%p438) target = $region68
        $region67: #{tpu_custom_call.1} parent=63 // pred_region
          %s441 = sand.u32 %s151, 1
          %s442 = scalar_lea.sflag [#allocation7], %s441
          %s443 = sand.u32 %s151, 1
          %s444 = smul.addr %s443, 8
          %s445 = scalar_lea.vmem [#allocation11], %s444
          %447 = dma.done %s442, 128
        $region68: #{tpu_custom_call.1} parent=63 // pred_fallthru
          _
      $region64: #{tpu_custom_call.1} parent=5 // pred_fallthru
        _
    $region6: #{tpu_custom_call.1} parent=1 // loop_footer
      %s24 = sadd.s32 1, %s20
    $region7: #{tpu_custom_call.1} parent=1 // loop_footer_branch
      %19 = sbr.rel target = $region3
    $region8: #{tpu_custom_call.1} parent=1 // loop_exit
      _
    %448 = vsyncpa [#allocation6], 1
    %s449 = scalar_lea.sflag [#allocation6], 1
    %450 = vsyncpa %s449, 1
    %451 = vsyncpa [#allocation9], 1
    %s452 = scalar_lea.sflag [#allocation9], 1
    %453 = vsyncpa %s452, 1
    %454 = vsyncpa [#allocation7], 1
    %s455 = scalar_lea.sflag [#allocation7], 1
    %456 = vsyncpa %s455, 1

</llo_original>
